<compile_context>
chip_gen: v5e
topology: v5e:2x2
jax: 0.10.0
libtpu: 0.0.40
codegen_flags: <defaults>
</compile_context>

<pallas_src>
import math
from typing import NamedTuple, Optional

import jax
import jax.numpy as jnp
from jax.experimental import pallas as pl
from jax.experimental.pallas import tpu as pltpu


# ----------------------------- kernels --------------------------------------


def _make_linear_kernel(has_bias: bool, direct_f32_out: bool):
    """Build the tiled-matmul kernel body.

    direct_f32_out: accumulate straight into the (k-resident) f32 output block
    (no scratch, no finalize pass).  Otherwise accumulate in an f32 VMEM
    scratch and cast/store on the last k step.
    """
    if direct_f32_out:
        if has_bias:
            def kernel(x_ref, w_ref, b_ref, o_ref):
                @pl.when(pl.program_id(2) == 0)
                def _():
                    o_ref[...] = jnp.broadcast_to(
                        b_ref[...].astype(jnp.float32), o_ref.shape)

                o_ref[...] += jnp.dot(x_ref[...], w_ref[...],
                                      preferred_element_type=jnp.float32)
        else:
            def kernel(x_ref, w_ref, o_ref):
                @pl.when(pl.program_id(2) == 0)
                def _():
                    o_ref[...] = jnp.zeros_like(o_ref)

                o_ref[...] += jnp.dot(x_ref[...], w_ref[...],
                                      preferred_element_type=jnp.float32)
    else:
        if has_bias:
            def kernel(x_ref, w_ref, b_ref, o_ref, acc_ref):
                k = pl.program_id(2)

                @pl.when(k == 0)
                def _():
                    acc_ref[...] = jnp.zeros_like(acc_ref)

                acc_ref[...] += jnp.dot(x_ref[...], w_ref[...],
                                        preferred_element_type=jnp.float32)

                @pl.when(k == pl.num_programs(2) - 1)
                def _():
                    o_ref[...] = (acc_ref[...]
                                  + b_ref[...].astype(jnp.float32)
                                  ).astype(o_ref.dtype)
        else:
            def kernel(x_ref, w_ref, o_ref, acc_ref):
                k = pl.program_id(2)

                @pl.when(k == 0)
                def _():
                    acc_ref[...] = jnp.zeros_like(acc_ref)

                acc_ref[...] += jnp.dot(x_ref[...], w_ref[...],
                                        preferred_element_type=jnp.float32)

                @pl.when(k == pl.num_programs(2) - 1)
                def _():
                    o_ref[...] = acc_ref[...].astype(o_ref.dtype)
    return kernel


# ----------------------------- helpers --------------------------------------


_SINGLE_K_MAX = 2048  # K below this runs as one full-extent block (no K pad)


def _round_up(v, m):
    return ((v + m - 1) // m) * m


def _largest_aligned_divisor(total, cap, align=128):
    """Largest multiple of `align` that divides `total` and is <= cap.
    `total` must itself be a multiple of `align`."""
    q = total // align
    limit = max(1, min(cap, total) // align)
    for d in range(limit, 0, -1):
        if q % d == 0:
            return d * align
    return align


def _vmem_budget_bytes():
    """Generation-aware scoped-VMEM cap: ~3/4 of physical VMEM (64 MiB per TC
    on v7x, 128 MiB on v5e/v6e), never above 100 MiB."""
    try:
        phys = int(pltpu.get_tpu_info().vmem_capacity_bytes)
    except Exception:
        phys = 64 << 20  # conservative (v7x per-TC) fallback
    return int(min(100 << 20, (phys * 3) // 4))


# ----------------------------- weight prep (hoisted) -------------------------


class PreparedLinear(NamedTuple):
    wt: jax.Array                 # (kp, np_) pre-transposed / padded / cast W^T
    bias2d: Optional[jax.Array]   # (1, np_) f32 bias, or None
    in_channels: int
    out_channels: int
    kp: int
    np_: int


def prepare_linear(weight, bias=None, compute_dtype=jnp.bfloat16):
    """One-time weight prep: transpose to (K, N), pad N (and K only if large
    and unaligned), cast to the MXU compute dtype.  Do this once at init and
    reuse across forwards — it is pure overhead in the hot path."""
    out_channels, in_channels = weight.shape
    cd = jnp.dtype(compute_dtype) if compute_dtype is not None else jnp.dtype(weight.dtype)

    # K padding policy: aligned or small K -> no padding at all.
    if in_channels % 128 == 0 or in_channels <= _SINGLE_K_MAX:
        kp = in_channels
    else:
        kp = _round_up(in_channels, 128)
    np_ = _round_up(out_channels, 128)   # lane-dense output

    wt = weight.T.astype(cd)
    if kp != in_channels or np_ != out_channels:
        wt = jnp.pad(wt, ((0, kp - in_channels), (0, np_ - out_channels)))

    bias2d = None
    if bias is not None:
        b = bias.astype(jnp.float32)
        if np_ != out_channels:
            b = jnp.pad(b, (0, np_ - out_channels))
        bias2d = b.reshape(1, np_)

    return PreparedLinear(wt=wt, bias2d=bias2d, in_channels=in_channels,
                          out_channels=out_channels, kp=kp, np_=np_)


# ----------------------------- forward --------------------------------------


def linear_apply(x, prep: PreparedLinear, *, force_pallas=False):
    """y = x @ W^T + b using the prepared weights (f32 accumulation)."""
    K, N = prep.in_channels, prep.out_channels
    assert x.shape[-1] == K, (x.shape, K)
    lead = x.shape[:-1]
    m = int(math.prod(lead))
    out_dtype = x.dtype
    cd = prep.wt.dtype
    x2d = x.reshape(m, K).astype(cd)

    # Tiny problems: XLA's fused matmul beats Pallas launch/DMA/pad overhead.
    if not force_pallas and (m * K * N) < (1 << 18):
        y = jnp.dot(x2d, prep.wt[:K], preferred_element_type=jnp.float32)[:, :N]
        if prep.bias2d is not None:
            y = y + prep.bias2d[:, :N]
        return y.astype(out_dtype).reshape(*lead, N)

    kp, np_ = prep.kp, prep.np_

    # --- tile selection: divisor-aware, lane-dense, VMEM-budget-aware -------
    m_align = 16 if jnp.dtype(cd).itemsize == 2 else 8   # clean sublane packing
    cap_tm, cap_tn, cap_tk = 512, 512, 2048

    tm = min(cap_tm, _round_up(m, m_align))
    mp = _round_up(m, tm)
    tk = _largest_aligned_divisor(kp, cap_tk) if kp % 128 == 0 else kp
    tn = _largest_aligned_divisor(np_, cap_tn)
    # Megacore: if the spatial grid collapsed to one block, split N so both
    # TensorCores (parallel axes) get work.
    if mp // tm == 1 and np_ // tn == 1 and np_ >= 256:
        tn = _largest_aligned_divisor(np_, max(128, np_ // 2))

    grid = (mp // tm, np_ // tn, kp // tk)

    # Pad only what is necessary (K is padded only for large, unaligned K).
    if mp != m or kp != K:
        x_p = jnp.pad(x2d, ((0, mp - m), (0, kp - K)))
    else:
        x_p = x2d

    direct = jnp.dtype(out_dtype) == jnp.float32
    has_bias = prep.bias2d is not None
    kernel = _make_linear_kernel(has_bias, direct)

    x_spec = pl.BlockSpec((tm, tk), lambda i, j, k: (i, k))
    w_spec = pl.BlockSpec((tk, tn), lambda i, j, k: (k, j))
    o_spec = pl.BlockSpec((tm, tn), lambda i, j, k: (i, j))  # k-resident accumulator
    in_specs = [x_spec, w_spec]
    operands = [x_p, prep.wt]
    if has_bias:
        in_specs.append(pl.BlockSpec((1, tn), lambda i, j, k: (0, j)))
        operands.append(prep.bias2d)
    scratch = [] if direct else [pltpu.VMEM((tm, tn), jnp.float32)]

    in_item = jnp.dtype(cd).itemsize
    out_item = jnp.dtype(out_dtype).itemsize
    # Double-buffered inputs + double-buffered output block (+ optional scratch).
    foot = (2 * (tm * tk + tk * tn) * in_item
            + 2 * tm * tn * out_item
            + (0 if direct else tm * tn * 4)
            + 2 * tn * 4)
    budget = _vmem_budget_bytes()
    vmem_limit = int(min(max(2 * foot + (4 << 20), 32 << 20), budget))
    vmem_limit = int(max(vmem_limit, foot + (2 << 20)))

    cost = pl.CostEstimate(
        flops=2 * mp * np_ * kp,
        transcendentals=0,
        bytes_accessed=(mp * kp + kp * np_) * in_item + mp * np_ * out_item,
    )

    out = pl.pallas_call(
        kernel,
        out_shape=jax.ShapeDtypeStruct((mp, np_), out_dtype),
        grid_spec=pltpu.PrefetchScalarGridSpec(
            num_scalar_prefetch=0,
            grid=grid,
            in_specs=in_specs,
            out_specs=o_spec,
            scratch_shapes=scratch,
        ),
        compiler_params=pltpu.CompilerParams(
            dimension_semantics=("parallel", "parallel", "arbitrary"),
            vmem_limit_bytes=vmem_limit,
        ),
        cost_estimate=cost,
    )(*operands)

    out = out[:m, :N]
    return out.reshape(*lead, N)


def pallas_linear(x, weight, bias=None, *, compute_dtype=jnp.bfloat16,
                  force_pallas=False):
    """Convenience one-shot wrapper (prep + apply).  For repeated calls use
    prepare_linear()/PallasLinear so the weight prep is hoisted."""
    prep = prepare_linear(weight, bias, compute_dtype=compute_dtype)
    return linear_apply(x, prep, force_pallas=force_pallas)


# ----------------------------- module analogue ------------------------------


def init_linear_params(key, in_channels, out_channels, bias=True,
                       weight_initializer="glorot", dtype=jnp.float32):
    """Deterministic init mirroring the module's reset_parameters()."""
    if weight_initializer == "glorot":
        # PyG inits.glorot: uniform(-a, a), a = sqrt(6 / (fan_in + fan_out))
        a = math.sqrt(6.0 / (in_channels + out_channels))
        weight = jax.random.uniform(
            key, (out_channels, in_channels), dtype=dtype, minval=-a, maxval=a)
    elif weight_initializer == "zeros":
        weight = jnp.zeros((out_channels, in_channels), dtype=dtype)
    else:
        raise ValueError(weight_initializer)
    b = jnp.zeros((out_channels,), dtype=dtype) if bias else None
    return weight, b


class PallasLinear:
    """Functional analogue of the PyTorch module.  Weight transpose / pad /
    cast are done ONCE here and reused by every forward."""

    def __init__(self, key, in_channels, out_channels, bias=True,
                 weight_initializer="glorot", dtype=jnp.float32,
                 compute_dtype=jnp.bfloat16):
        self.in_channels = in_channels
        self.out_channels = out_channels
        self.weight, self.bias = init_linear_params(
            key, in_channels, out_channels, bias=bias,
            weight_initializer=weight_initializer, dtype=dtype)
        self._prep = prepare_linear(self.weight, self.bias,
                                    compute_dtype=compute_dtype)

    def __call__(self, x, *, force_pallas=False):
        return linear_apply(x, self._prep, force_pallas=force_pallas)


# ----------------------------- example / check ------------------------------


if __name__ == "__main__":
    key = jax.random.PRNGKey(0)
    k_w, k_x, k_w2, k_x2, k_b2 = jax.random.split(key, 5)

    # --- module-sized example (batch=2, seq=8, in=32, out=64) ---------------
    in_c, out_c = 32, 64
    batch, seq = 2, 8
    lin = PallasLinear(k_w, in_c, out_c, bias=True)          # prep hoisted once
    x = jax.random.normal(k_x, (batch, seq, in_c), dtype=jnp.float32)

    y = jax.block_until_ready(lin(x, force_pallas=True))
    # Reference with the SAME bf16-rounded inputs (f32 accumulation), so only
    # accumulation-order noise remains -> tight tolerance.
    xc = x.astype(jnp.bfloat16).astype(jnp.float32)
    wc = lin.weight.astype(jnp.bfloat16).astype(jnp.float32)
    y_ref = jnp.einsum("bsk,ok->bso", xc, wc) + lin.bias
    assert y.shape == (batch, seq, out_c) and y.dtype == x.dtype
    assert jnp.allclose(y, y_ref, atol=5e-3, rtol=5e-3)

    # bias=None path (separate bias-less kernel), bf16 compute
    y_nb = jax.block_until_ready(
        pallas_linear(x, lin.weight, None, force_pallas=True))
    assert jnp.allclose(y_nb, jnp.einsum("bsk,ok->bso", xc, wc),
                        atol=5e-3, rtol=5e-3)

    # full-f32 input path (compute_dtype=None).  MXU f32 matmul precision is
    # implementation-defined (multi-pass decomposition), so this is a loose
    # sanity check only.
    y32 = jax.block_until_ready(
        pallas_linear(x, lin.weight, lin.bias, compute_dtype=None,
                      force_pallas=True))
    y32_ref = jnp.einsum("bsk,ok->bso", x, lin.weight) + lin.bias
    assert jnp.allclose(y32, y32_ref, atol=1e-1, rtol=5e-2)

    # --- larger check: non-power-of-two N, K multiple of 128 ----------------
    # Exercises divisor-aware tiles (tk=768 with no K padding, tn a divisor of
    # 384), M padding, and the megacore tn split.
    in2, out2 = 768, 320
    b2_, s2_ = 2, 132                      # M = 264
    a2 = math.sqrt(6.0 / (in2 + out2))
    w2 = jax.random.uniform(k_w2, (out2, in2), dtype=jnp.float32,
                            minval=-a2, maxval=a2)
    bias2 = jax.random.normal(k_b2, (out2,), dtype=jnp.float32) * 0.1
    x2 = jax.random.normal(k_x2, (b2_, s2_, in2), dtype=jnp.float32)

    y2 = jax.block_until_ready(pallas_linear(x2, w2, bias2, force_pallas=True))
    x2c = x2.astype(jnp.bfloat16).astype(jnp.float32)
    w2c = w2.astype(jnp.bfloat16).astype(jnp.float32)
    y2_ref = jnp.einsum("bsk,ok->bso", x2c, w2c) + bias2
    assert y2.shape == (b2_, s2_, out2) and y2.dtype == jnp.float32
    assert jnp.allclose(y2, y2_ref, atol=5e-3, rtol=5e-3)

    print("KERNEL_OK")
</pallas_src>

<mosaic_0001>
module attributes {stable_mosaic.version = 11 : i64} {
  func.func @kernel(%arg0: i32, %arg1: i32, %arg2: i32, %arg3: memref<16x32xbf16, #tpu.memory_space<vmem>>, %arg4: memref<32x128xbf16, #tpu.memory_space<vmem>>, %arg5: memref<1x128xf32, #tpu.memory_space<vmem>>, %arg6: memref<16x128xf32, #tpu.memory_space<vmem>>) attributes {dimension_semantics = [#tpu.dimension_semantics<parallel>, #tpu.dimension_semantics<parallel>, #tpu.dimension_semantics<arbitrary>], iteration_bounds = array<i64: 1, 1, 1>, scalar_prefetch = 0 : i64, scratch_operands = 0 : i64, tpu.core_type = #tpu.core_type<tc>, window_params = [{transform_indices = @transform_0, window_bounds = array<i64: 16, 32>}, {transform_indices = @transform_1, window_bounds = array<i64: 32, 128>}, {transform_indices = @transform_2, window_bounds = array<i64: 1, 128>}, {transform_indices = @transform_3, window_bounds = array<i64: 16, 128>}]} {
    %c0_i32 = arith.constant 0 : i32
    %0 = arith.cmpi eq, %arg2, %c0_i32 : i32
    %1 = arith.extui %0 : i1 to i32
    %c0_i32_0 = arith.constant 0 : i32
    %2 = arith.cmpi ne, %1, %c0_i32_0 : i32
    scf.if %2 {
      %c0_8 = arith.constant 0 : index
      %c0_9 = arith.constant 0 : index
      %9 = vector.load %arg5[%c0_8, %c0_9] : memref<1x128xf32, #tpu.memory_space<vmem>>, vector<1x128xf32>
      %10 = vector.shape_cast %9 : vector<1x128xf32> to vector<1x128xf32>
      %11 = vector.broadcast %10 : vector<1x128xf32> to vector<16x128xf32>
      %c0_10 = arith.constant 0 : index
      %c0_11 = arith.constant 0 : index
      %12 = vector.load %arg6[%c0_10, %c0_11] : memref<16x128xf32, #tpu.memory_space<vmem>>, vector<16x128xf32>
      tpu.vector_store %arg6[%c0_10, %c0_11], %11 {strides = array<i32>} : memref<16x128xf32, #tpu.memory_space<vmem>>, vector<16x128xf32>,
    } else {
    }
    %c0 = arith.constant 0 : index
    %c0_1 = arith.constant 0 : index
    %3 = vector.load %arg6[%c0, %c0_1] : memref<16x128xf32, #tpu.memory_space<vmem>>, vector<16x128xf32>
    %c0_2 = arith.constant 0 : index
    %c0_3 = arith.constant 0 : index
    %4 = vector.load %arg3[%c0_2, %c0_3] : memref<16x32xbf16, #tpu.memory_space<vmem>>, vector<16x32xbf16>
    %c0_4 = arith.constant 0 : index
    %c0_5 = arith.constant 0 : index
    %5 = vector.load %arg4[%c0_4, %c0_5] : memref<32x128xbf16, #tpu.memory_space<vmem>>, vector<32x128xbf16>
    %cst = arith.constant dense<0.000000e+00> : vector<16x128xf32>
    %6 = tpu.matmul %4, %5, %cst {dimension_numbers = #tpu.dot_dimension_numbers<[1], [0], [0], [1], [0, 0, 1, 1], [], []>} : vector<16x32xbf16>, vector<32x128xbf16>, vector<16x128xf32> -> vector<16x128xf32>
    %7 = arith.addf %3, %6 : vector<16x128xf32>
    %c0_6 = arith.constant 0 : index
    %c0_7 = arith.constant 0 : index
    %8 = vector.load %arg6[%c0_6, %c0_7] : memref<16x128xf32, #tpu.memory_space<vmem>>, vector<16x128xf32>
    tpu.vector_store %arg6[%c0_6, %c0_7], %7 {strides = array<i32>} : memref<16x128xf32, #tpu.memory_space<vmem>>, vector<16x128xf32>,
    return
  }
  func.func @transform_0(%arg0: i32, %arg1: i32, %arg2: i32) -> (i32, i32) {
    %c0_i32 = arith.constant 0 : i32
    return %arg0, %arg2 : i32, i32
  }
  func.func @transform_1(%arg0: i32, %arg1: i32, %arg2: i32) -> (i32, i32) {
    %c0_i32 = arith.constant 0 : i32
    return %arg2, %arg1 : i32, i32
  }
  func.func @transform_2(%arg0: i32, %arg1: i32, %arg2: i32) -> (i32, i32) {
    %c0_i32 = arith.constant 0 : i32
    %c0_i32_0 = arith.constant 0 : i32
    return %c0_i32, %arg1 : i32, i32
  }
  func.func @transform_3(%arg0: i32, %arg1: i32, %arg2: i32) -> (i32, i32) {
    %c0_i32 = arith.constant 0 : i32
    return %arg0, %arg1 : i32, i32
  }
}

</mosaic_0001>

<llo_original>
// kernel: tpu_custom_call.1
$region0: #{tpu_custom_call.1}
  #allocation0 [shape = 'u32[]', space=smem, size = 0x4, offset = 0x4, fixed_abs, tag = 'smem constant byte address 0x4 - core index']
  #allocation1 [shape = 'u32[72,128]{1,0:T(1,128)}', space=vmem, size = 0x9000, scoped, tag = 'internal scratch']
  %s0 = inlined_call_operand.hbm [shape: bf16[16,32], index: 0, kind: input, shape index: {}]
  %s1 = inlined_call_operand.hbm [shape: bf16[32,128], index: 1, kind: input, shape index: {}]
  %s2 = inlined_call_operand.vmem [shape: f32[1,128], index: 2, kind: input, shape index: {}]
  %s3 = inlined_call_operand.hbm [shape: f32[16,128], index: 3, kind: output, shape index: {}]
  %s4 = sld [smem:[#allocation0]]
  $region34: #{tpu_custom_call.1} parent=0
    _
  %s6 = ssub.s32 1, %s4
  %s7 = scalar_select 0, %s6, %s4
  $region1: #{tpu_custom_call.1} parent=0
    #allocation2 [shape = 'u8[4096]{0}', space=vmem, size = 0x1000, scoped, tag = 'input window, operand 0, single buffered']
    #allocation3 [shape = 's32[1]{0}', space=sflag, size = 0x4, scoped, tag = 'scoped memory for tpu_custom_call.1']
    #allocation4 [shape = 's32[1]{0}', space=sflag, size = 0x4, scoped, tag = 'scoped memory for tpu_custom_call.1']
    #allocation5 [shape = 'u8[8192]{0}', space=vmem, size = 0x2000, scoped, tag = 'input window, operand 1, single buffered']
    #allocation6 [shape = 's32[1]{0}', space=sflag, size = 0x4, scoped, tag = 'scoped memory for tpu_custom_call.1']
    #allocation7 [shape = 'u8[8192]{0}', space=vmem, size = 0x2000, scoped, tag = 'output window, operand 0, single buffered']
    %8 = vsyncpa [#allocation3], 0
    %9 = vsyncpa [#allocation6], 0
    %10 = vsyncpa [#allocation4], 0
    // Predicated region
    $region2: #{tpu_custom_call.1} parent=1 // pred_check
      _
    $region3: #{tpu_custom_call.1} parent=1 // pred_check_branch
      %12 = sbr.rel (0) target = $region5
    $region4: #{tpu_custom_call.1} parent=1 // pred_region
      %14 = vsyncadd [#allocation3], 0
      %s15 = sshll.u32 %s0, 4
      %s16 = int_to_ptr.hbm [resolvable:$true] %s15
      %s17 = sshll.u32 [#allocation2], 4
      %s18 = int_to_ptr.vmem [resolvable:$true] %s17
      %23 = dma.hbm_to_vmem [thread:$0]  %s16, 128, %s18, [#allocation3], 64, 64, 4
    $region5: #{tpu_custom_call.1} parent=1 // pred_fallthru
      _
    // Predicated region
    $region6: #{tpu_custom_call.1} parent=1 // pred_check
      _
    $region7: #{tpu_custom_call.1} parent=1 // pred_check_branch
      %25 = sbr.rel (0) target = $region9
    $region8: #{tpu_custom_call.1} parent=1 // pred_region
      %27 = vsyncadd [#allocation6], 0
      %s28 = sshll.u32 %s1, 4
      %s29 = int_to_ptr.hbm [resolvable:$true] %s28
      %s30 = sshll.u32 [#allocation5], 4
      %s31 = int_to_ptr.vmem [resolvable:$true] %s30
      %36 = dma.hbm_to_vmem [thread:$0]  %s29, 256, %s31, [#allocation6], 64, 64, 4
    $region9: #{tpu_custom_call.1} parent=1 // pred_fallthru
      _
    // Predicated region
    $region10: #{tpu_custom_call.1} parent=1 // pred_check
      _
    $region11: #{tpu_custom_call.1} parent=1 // pred_check_branch
      %38 = sbr.rel (0) target = $region13
    $region12: #{tpu_custom_call.1} parent=1 // pred_region
      _
    $region13: #{tpu_custom_call.1} parent=1 // pred_fallthru
      _
    // Predicated region
    $region14: #{tpu_custom_call.1} parent=1 // pred_check
      _
    $region15: #{tpu_custom_call.1} parent=1 // pred_check_branch
      %40 = sbr.rel (0) target = $region17
    $region16: #{tpu_custom_call.1} parent=1 // pred_region
      %42 = dma.done [#allocation3], 128
    $region17: #{tpu_custom_call.1} parent=1 // pred_fallthru
      _
    // Predicated region
    $region18: #{tpu_custom_call.1} parent=1 // pred_check
      _
    $region19: #{tpu_custom_call.1} parent=1 // pred_check_branch
      %44 = sbr.rel (0) target = $region21
    $region20: #{tpu_custom_call.1} parent=1 // pred_region
      %46 = dma.done [#allocation6], 256
    $region21: #{tpu_custom_call.1} parent=1 // pred_fallthru
      _
    %p48 = scmp.eq.s32.totalorder 0, 0
    // Predicated region
    $region22: #{tpu_custom_call.1} parent=1 // pred_check
      %p49 = pneg %p48
    $region23: #{tpu_custom_call.1} parent=1 // pred_check_branch
      %51 = sbr.rel (%p49) target = $region25
    $region24: #{tpu_custom_call.1} parent=1 // pred_region
      %v52 = vld [vmem:[%s2] sm:$0x1]
      %v54 = vperm.slane %v52, 0
      %56 = vst [vmem:[#allocation7] sm:$0xff] %v54
      %57 = vst [vmem:[#allocation7 + $0x8] sm:$0xff] %v54
    $region25: #{tpu_custom_call.1} parent=1 // pred_fallthru
      _
    %v58 = vld [vmem:[#allocation7] sm:$0xff]
    %v59 = vld [vmem:[#allocation7 + $0x8] sm:$0xff]
    %v60 = vld [vmem:[#allocation2] sm:$0xf]
    %v61 = vld [vmem:[#allocation2 + $0x4] sm:$0xf]
    %v62 = vld [vmem:[#allocation5] sm:$0xf]
    %v63 = vld [vmem:[#allocation5 + $0x4] sm:$0xf]
    %v64 = vld [vmem:[#allocation5 + $0x8] sm:$0xf]
    %v65 = vld [vmem:[#allocation5 + $0xc] sm:$0xf]
    %v68 = vunpack.c.l.b16 %v60
    %v69 = vunpack.c.l.b16 %v61
    %v70 = vpack.c.b16 %v69, %v68
    %v75 = vunpack.c.l.b16 %v62
    %v76 = vunpack.c.l.b16 %v63
    %v77 = vunpack.c.l.b16 %v64
    %v78 = vunpack.c.l.b16 %v65
    %v79 = vpack.c.b16 %v76, %v75
    %v80 = vpack.c.b16 %v78, %v77
    %vm83 = vcmask 261120
    %v85 = vsel %vm83, %v70, 0
    %87 = vmatpush.bf16.msra.mxu0 0
    %88 = vmatpush.bf16.msra.mxu0 0
    %89 = vmatpush.bf16.msra.mxu0 0
    %90 = vmatpush.bf16.msra.mxu0 0
    %91 = vmatpush.bf16.msra.mxu0 0
    %92 = vmatpush.bf16.msra.mxu0 0
    %93 = vmatpush.bf16.msra.mxu0 %v80
    %94 = vmatpush.bf16.msra.mxu0 %v79
    %95 = vmatmul.bf16.gmra.mxu0 %v85
    %v96 = vpop.f32.mrf.mxu0
    %v97 = vadd.f32 0.0, %v96
    %v98 = vpop.f32.mrf.mxu0
    %v99 = vadd.f32 0.0, %v98
    %100 = vdwg.mxu0
    %v101 = vadd.f32 %v58, %v97
    %v102 = vadd.f32 %v59, %v99
    %103 = vst [vmem:[#allocation7] sm:$0xff] %v101
    %104 = vst [vmem:[#allocation7 + $0x8] sm:$0xff] %v102
    // Predicated region
    $region26: #{tpu_custom_call.1} parent=1 // pred_check
      _
    $region27: #{tpu_custom_call.1} parent=1 // pred_check_branch
      %106 = sbr.rel (0) target = $region29
    $region28: #{tpu_custom_call.1} parent=1 // pred_region
      %108 = vsyncadd [#allocation4], 0
      %s109 = sshll.u32 [#allocation7], 4
      %s110 = int_to_ptr.vmem [resolvable:$true] %s109
      %s111 = sshll.u32 %s3, 4
      %s112 = int_to_ptr.hbm [resolvable:$true] %s111
      %117 = dma.vmem_to_hbm [thread:$0]  %s110, 256, %s112, [#allocation4], 128, 128, 8
    $region29: #{tpu_custom_call.1} parent=1 // pred_fallthru
      _
    // Predicated region
    $region30: #{tpu_custom_call.1} parent=1 // pred_check
      _
    $region31: #{tpu_custom_call.1} parent=1 // pred_check_branch
      %119 = sbr.rel (0) target = $region33
    $region32: #{tpu_custom_call.1} parent=1 // pred_region
      %121 = dma.done [#allocation4], 256
    $region33: #{tpu_custom_call.1} parent=1 // pred_fallthru
      _
    %122 = vsyncpa [#allocation3], 1
    %123 = vsyncpa [#allocation6], 1
    %124 = vsyncpa [#allocation4], 1

</llo_original>
